<compile_context>
chip_gen: v6e
topology: v6e:2x2x1
jax: 0.10.0
libtpu: 0.0.40
codegen_flags: <defaults>
</compile_context>

<pallas_src>
import jax
import jax.numpy as jnp
from jax.experimental import pallas as pl
from jax.experimental.pallas import tpu as pltpu

# Problem configuration (small, consistent with the module).
N, CIN, H, W = 2, 4, 16, 16
COUT = 8
KH = KW = 3
PAD = 1
EPS = 1e-5          # nn.BatchNorm2d default
SLOPE = 0.01        # nn.LeakyReLU default negative_slope

M = N * H * W                 # 512 output pixels -> lane dim (multiple of 128)
SHIFT_PAD = PAD * W + PAD     # largest |flat-index shift| over all taps (17)
MP = M + 2 * SHIFT_PAD        # padded flattened-spatial extent (in-kernel scratch)
KTOT = KH * KW * CIN          # fused contraction depth (36)


def basic_conv_kernel(x_ref, w_ref, gb_ref, o_ref, xpad_ref, im2col_ref):
    # x_ref:      (CIN, M)        channel-major flattened input (unpadded)
    # w_ref:      (COUT, KTOT)    im2col-ordered conv weights (lane-contiguous)
    # gb_ref:     (COUT, 2)       column 0 = gamma, column 1 = beta
    # o_ref:      (COUT, M)       lane-dense transposed output
    # xpad_ref:   (CIN, MP)       VMEM scratch: zero-padded flattened input
    # im2col_ref: (KTOT, M)       VMEM scratch: fused im2col matrix

    # --- in-kernel zero padding (replaces the wrapper-side jnp.pad) ---
    xpad_ref[...] = jnp.zeros((CIN, MP), jnp.float32)
    xpad_ref[:, pl.ds(SHIFT_PAD, M)] = x_ref[...]

    # Per-output-column (n, h, w) coordinates; H, W are powers of two (asserted
    # in the wrapper) so mod reduces to a bitwise AND on the VPU.
    col = jax.lax.broadcasted_iota(jnp.int32, (1, M), 1)
    hw_idx = jnp.bitwise_and(col, H * W - 1)   # h*W + w within one image
    w_idx = jnp.bitwise_and(col, W - 1)        # w within one row

    # --- hoisted boundary masks: one compare per distinct dh / dw ---
    row_masks = {}
    for kh in range(KH):
        dh = kh - PAD
        if dh > 0:
            row_masks[dh] = hw_idx < (H - dh) * W      # h + dh <= H-1
        elif dh < 0:
            row_masks[dh] = hw_idx >= (-dh) * W        # h + dh >= 0
        else:
            row_masks[dh] = None
    col_masks = {}
    for kw in range(KW):
        dw = kw - PAD
        if dw > 0:
            col_masks[dw] = w_idx < (W - dw)           # w + dw <= W-1
        elif dw < 0:
            col_masks[dw] = w_idx >= (-dw)             # w + dw >= 0
        else:
            col_masks[dw] = None

    # --- build the (KTOT, M) im2col matrix: each tap is a statically shifted
    #     window of the padded buffer, border-masked, written once to scratch ---
    for kh in range(KH):
        for kw in range(KW):
            dh = kh - PAD
            dw = kw - PAD
            start = SHIFT_PAD + dh * W + dw            # static window offset
            tap = xpad_ref[:, pl.ds(start, M)]         # (CIN, M) shifted view
            mask = row_masks[dh]
            cmask = col_masks[dw]
            if mask is None:
                mask = cmask
            elif cmask is not None:
                mask = jnp.logical_and(mask, cmask)
            if mask is not None:
                tap = jnp.where(mask, tap, 0.0)
            im2col_ref[pl.ds((kh * KW + kw) * CIN, CIN), :] = tap

    # --- convolution: ONE K = KH*KW*CIN MXU contraction ---
    acc = jnp.dot(w_ref[...], im2col_ref[...],
                  preferred_element_type=jnp.float32)          # (COUT, M)

    # --- BatchNorm2d: training-mode batch statistics over (N, H, W), two-pass
    #     (cancellation-safe) variance, folded into one per-channel affine ---
    inv_m = jnp.float32(1.0 / M)
    mean = jnp.sum(acc, axis=1, keepdims=True) * inv_m          # (COUT, 1)
    centered = acc - mean
    var = jnp.sum(centered * centered, axis=1, keepdims=True) * inv_m
    gamma = gb_ref[:, 0:1]
    beta = gb_ref[:, 1:2]
    a = gamma * jax.lax.rsqrt(var + EPS)                        # EUP rsqrt
    y = centered * a + beta                                     # one mul + one add

    # --- LeakyReLU ---
    o_ref[...] = jnp.where(y >= 0.0, y, SLOPE * y)
    # TODO(synk): running_mean / running_var buffer updates are a training-only
    # side effect with no influence on the forward output; not emitted here.


def basic_conv_forward(x_nchw, w_pt, gamma, beta):
    """x_nchw: (N, CIN, H, W); w_pt: (COUT, CIN, KH, KW) PyTorch OIHW layout."""
    n, cin, h, w = x_nchw.shape
    cout = w_pt.shape[0]
    assert (h & (h - 1)) == 0 and (w & (w - 1)) == 0, "mask fast path assumes pow2 H, W"
    m = n * h * w

    # Channel-major flatten (pure layout glue).  Ideally this (C, N*H*W) layout
    # is kept persistent across layers so this transpose and the final one
    # cancel with adjacent layers.
    x_t = jnp.transpose(x_nchw, (1, 0, 2, 3)).reshape(cin, m).astype(jnp.float32)

    # (COUT, CIN, KH, KW) -> (COUT, KH, KW, CIN) -> (COUT, KH*KW*CIN): one
    # lane-contiguous weight tile whose K order matches the im2col row order.
    w_flat = jnp.transpose(w_pt, (0, 2, 3, 1)).reshape(cout, KH * KW * cin)
    w_flat = w_flat.astype(jnp.float32)

    # gamma / beta merged into a single (COUT, 2) tile.
    gb = jnp.stack(
        [gamma.reshape(cout).astype(jnp.float32),
         beta.reshape(cout).astype(jnp.float32)], axis=1)

    out_t = pl.pallas_call(
        basic_conv_kernel,
        out_shape=jax.ShapeDtypeStruct((cout, m), jnp.float32),
        grid=(1,),
        in_specs=[
            pl.BlockSpec((cin, m), lambda i: (0, 0)),
            pl.BlockSpec((cout, KH * KW * cin), lambda i: (0, 0)),
            pl.BlockSpec((cout, 2), lambda i: (0, 0)),
        ],
        out_specs=pl.BlockSpec((cout, m), lambda i: (0, 0)),
        scratch_shapes=[
            pltpu.VMEM((cin, m + 2 * SHIFT_PAD), jnp.float32),   # padded input
            pltpu.VMEM((KH * KW * cin, m), jnp.float32),         # im2col matrix
        ],
        compiler_params=pltpu.CompilerParams(
            dimension_semantics=("arbitrary",),
        ),
    )(x_t, w_flat, gb)

    # Back to PyTorch NCHW: (COUT, N*H*W) -> (N, COUT, H, W).
    return jnp.transpose(out_t.reshape(cout, n, h, w), (1, 0, 2, 3))


def reference_forward(x_nchw, w_pt, gamma, beta):
    """Pure-JAX reference of the PyTorch forward (train-mode BN)."""
    y = jax.lax.conv_general_dilated(
        x_nchw.astype(jnp.float32),
        w_pt.astype(jnp.float32),
        window_strides=(1, 1),
        padding=[(PAD, PAD), (PAD, PAD)],
        dimension_numbers=("NCHW", "OIHW", "NCHW"),
    )
    mean = jnp.mean(y, axis=(0, 2, 3), keepdims=True)
    var = jnp.mean((y - mean) ** 2, axis=(0, 2, 3), keepdims=True)
    yhat = (y - mean) * jax.lax.rsqrt(var + EPS)
    yhat = yhat * gamma.reshape(1, -1, 1, 1) + beta.reshape(1, -1, 1, 1)
    return jnp.where(yhat >= 0.0, yhat, SLOPE * yhat)


if __name__ == "__main__":
    key = jax.random.PRNGKey(0)
    kx, kw = jax.random.split(key)

    x = jax.random.normal(kx, (N, CIN, H, W), dtype=jnp.float32)
    # Deterministic synthetic conv weight (PyTorch OIHW layout), no bias.
    weight = jax.random.normal(kw, (COUT, CIN, KH, KW), dtype=jnp.float32) * 0.1
    # BatchNorm2d parameter init: weight=1, bias=0.
    gamma = jnp.ones((COUT,), dtype=jnp.float32)
    beta = jnp.zeros((COUT,), dtype=jnp.float32)

    out = basic_conv_forward(x, weight, gamma, beta)
    out = jax.block_until_ready(out)

    ref = reference_forward(x, weight, gamma, beta)
    assert out.shape == (N, COUT, H, W), out.shape
    assert jnp.allclose(out, ref, atol=1e-4, rtol=1e-4), (
        float(jnp.max(jnp.abs(out - ref)))
    )
    print("KERNEL_OK")
</pallas_src>

<mosaic_0001>
module attributes {stable_mosaic.version = 11 : i64} {
  func.func @basic_conv_kernel(%arg0: i32, %arg1: memref<4x512xf32, #tpu.memory_space<vmem>>, %arg2: memref<8x36xf32, #tpu.memory_space<vmem>>, %arg3: memref<8x2xf32, #tpu.memory_space<vmem>>, %arg4: memref<8x512xf32, #tpu.memory_space<vmem>>, %arg5: memref<4x546xf32, #tpu.memory_space<vmem>>, %arg6: memref<36x512xf32, #tpu.memory_space<vmem>>) attributes {dimension_semantics = [#tpu.dimension_semantics<arbitrary>], iteration_bounds = array<i64: 1>, scalar_prefetch = 0 : i64, scratch_operands = 2 : i64, tpu.core_type = #tpu.core_type<tc>, window_params = [{pipeline_mode = #tpu.pipeline_mode<synchronous>, transform_indices = @transform_0, window_bounds = array<i64: 4, 512>}, {pipeline_mode = #tpu.pipeline_mode<synchronous>, transform_indices = @transform_1, window_bounds = array<i64: 8, 36>}, {pipeline_mode = #tpu.pipeline_mode<synchronous>, transform_indices = @transform_2, window_bounds = array<i64: 8, 2>}, {pipeline_mode = #tpu.pipeline_mode<synchronous>, transform_indices = @transform_3, window_bounds = array<i64: 8, 512>}]} {
    %cst = arith.constant 0.000000e+00 : f32
    %0 = vector.broadcast %cst : f32 to vector<4x546xf32>
    %c0 = arith.constant 0 : index
    %c0_0 = arith.constant 0 : index
    %1 = vector.load %arg5[%c0, %c0_0] : memref<4x546xf32, #tpu.memory_space<vmem>>, vector<4x546xf32>
    tpu.vector_store %arg5[%c0, %c0_0], %0 {strides = array<i32>} : memref<4x546xf32, #tpu.memory_space<vmem>>, vector<4x546xf32>,
    %c0_1 = arith.constant 0 : index
    %c0_2 = arith.constant 0 : index
    %2 = vector.load %arg1[%c0_1, %c0_2] : memref<4x512xf32, #tpu.memory_space<vmem>>, vector<4x512xf32>
    %c0_3 = arith.constant 0 : index
    %c17 = arith.constant 17 : index
    %3 = vector.load %arg5[%c0_3, %c17] : memref<4x546xf32, #tpu.memory_space<vmem>>, vector<4x512xf32>
    tpu.vector_store %arg5[%c0_3, %c17], %2 {strides = array<i32>} : memref<4x546xf32, #tpu.memory_space<vmem>>, vector<4x512xf32>,
    %4 = tpu.iota {dimensions = array<i32: 1>} : vector<1x512xi32>
    %c255_i32 = arith.constant 255 : i32
    %5 = vector.broadcast %c255_i32 : i32 to vector<1x512xi32>
    %6 = arith.andi %4, %5 : vector<1x512xi32>
    %c15_i32 = arith.constant 15 : i32
    %7 = vector.broadcast %c15_i32 : i32 to vector<1x512xi32>
    %8 = arith.andi %4, %7 : vector<1x512xi32>
    %c16_i32 = arith.constant 16 : i32
    %9 = vector.broadcast %c16_i32 : i32 to vector<1x512xi32>
    %10 = arith.cmpi sge, %6, %9 : vector<1x512xi32>
    %c240_i32 = arith.constant 240 : i32
    %11 = vector.broadcast %c240_i32 : i32 to vector<1x512xi32>
    %12 = arith.cmpi slt, %6, %11 : vector<1x512xi32>
    %c1_i32 = arith.constant 1 : i32
    %13 = vector.broadcast %c1_i32 : i32 to vector<1x512xi32>
    %14 = arith.cmpi sge, %8, %13 : vector<1x512xi32>
    %c15_i32_4 = arith.constant 15 : i32
    %15 = vector.broadcast %c15_i32_4 : i32 to vector<1x512xi32>
    %16 = arith.cmpi slt, %8, %15 : vector<1x512xi32>
    %c0_5 = arith.constant 0 : index
    %c0_6 = arith.constant 0 : index
    %17 = vector.load %arg5[%c0_5, %c0_6] : memref<4x546xf32, #tpu.memory_space<vmem>>, vector<4x512xf32>
    %18 = arith.andi %10, %14 : vector<1x512xi1>
    %cst_7 = arith.constant 0.000000e+00 : f32
    %19 = vector.shape_cast %18 : vector<1x512xi1> to vector<1x512xi1>
    %20 = vector.broadcast %19 : vector<1x512xi1> to vector<4x512xi1>
    %21 = vector.broadcast %cst_7 : f32 to vector<4x512xf32>
    %22 = arith.select %20, %17, %21 : vector<4x512xi1>, vector<4x512xf32>
    %c0_8 = arith.constant 0 : index
    %c0_9 = arith.constant 0 : index
    %23 = vector.load %arg6[%c0_8, %c0_9] : memref<36x512xf32, #tpu.memory_space<vmem>>, vector<4x512xf32>
    tpu.vector_store %arg6[%c0_8, %c0_9], %22 {strides = array<i32>} : memref<36x512xf32, #tpu.memory_space<vmem>>, vector<4x512xf32>,
    %c0_10 = arith.constant 0 : index
    %c1 = arith.constant 1 : index
    %24 = vector.load %arg5[%c0_10, %c1] : memref<4x546xf32, #tpu.memory_space<vmem>>, vector<4x512xf32>
    %cst_11 = arith.constant 0.000000e+00 : f32
    %25 = vector.shape_cast %10 : vector<1x512xi1> to vector<1x512xi1>
    %26 = vector.broadcast %25 : vector<1x512xi1> to vector<4x512xi1>
    %27 = vector.broadcast %cst_11 : f32 to vector<4x512xf32>
    %28 = arith.select %26, %24, %27 : vector<4x512xi1>, vector<4x512xf32>
    %c4 = arith.constant 4 : index
    %c0_12 = arith.constant 0 : index
    %29 = vector.load %arg6[%c4, %c0_12] : memref<36x512xf32, #tpu.memory_space<vmem>>, vector<4x512xf32>
    tpu.vector_store %arg6[%c4, %c0_12], %28 {strides = array<i32>} : memref<36x512xf32, #tpu.memory_space<vmem>>, vector<4x512xf32>,
    %c0_13 = arith.constant 0 : index
    %c2 = arith.constant 2 : index
    %30 = vector.load %arg5[%c0_13, %c2] : memref<4x546xf32, #tpu.memory_space<vmem>>, vector<4x512xf32>
    %31 = arith.andi %10, %16 : vector<1x512xi1>
    %cst_14 = arith.constant 0.000000e+00 : f32
    %32 = vector.shape_cast %31 : vector<1x512xi1> to vector<1x512xi1>
    %33 = vector.broadcast %32 : vector<1x512xi1> to vector<4x512xi1>
    %34 = vector.broadcast %cst_14 : f32 to vector<4x512xf32>
    %35 = arith.select %33, %30, %34 : vector<4x512xi1>, vector<4x512xf32>
    %c8 = arith.constant 8 : index
    %c0_15 = arith.constant 0 : index
    %36 = vector.load %arg6[%c8, %c0_15] : memref<36x512xf32, #tpu.memory_space<vmem>>, vector<4x512xf32>
    tpu.vector_store %arg6[%c8, %c0_15], %35 {strides = array<i32>} : memref<36x512xf32, #tpu.memory_space<vmem>>, vector<4x512xf32>,
    %c0_16 = arith.constant 0 : index
    %c16 = arith.constant 16 : index
    %37 = vector.load %arg5[%c0_16, %c16] : memref<4x546xf32, #tpu.memory_space<vmem>>, vector<4x512xf32>
    %cst_17 = arith.constant 0.000000e+00 : f32
    %38 = vector.shape_cast %14 : vector<1x512xi1> to vector<1x512xi1>
    %39 = vector.broadcast %38 : vector<1x512xi1> to vector<4x512xi1>
    %40 = vector.broadcast %cst_17 : f32 to vector<4x512xf32>
    %41 = arith.select %39, %37, %40 : vector<4x512xi1>, vector<4x512xf32>
    %c12 = arith.constant 12 : index
    %c0_18 = arith.constant 0 : index
    %42 = vector.load %arg6[%c12, %c0_18] : memref<36x512xf32, #tpu.memory_space<vmem>>, vector<4x512xf32>
    tpu.vector_store %arg6[%c12, %c0_18], %41 {strides = array<i32>} : memref<36x512xf32, #tpu.memory_space<vmem>>, vector<4x512xf32>,
    %c0_19 = arith.constant 0 : index
    %c17_20 = arith.constant 17 : index
    %43 = vector.load %arg5[%c0_19, %c17_20] : memref<4x546xf32, #tpu.memory_space<vmem>>, vector<4x512xf32>
    %c16_21 = arith.constant 16 : index
    %c0_22 = arith.constant 0 : index
    %44 = vector.load %arg6[%c16_21, %c0_22] : memref<36x512xf32, #tpu.memory_space<vmem>>, vector<4x512xf32>
    tpu.vector_store %arg6[%c16_21, %c0_22], %43 {strides = array<i32>} : memref<36x512xf32, #tpu.memory_space<vmem>>, vector<4x512xf32>,
    %c0_23 = arith.constant 0 : index
    %c18 = arith.constant 18 : index
    %45 = vector.load %arg5[%c0_23, %c18] : memref<4x546xf32, #tpu.memory_space<vmem>>, vector<4x512xf32>
    %cst_24 = arith.constant 0.000000e+00 : f32
    %46 = vector.shape_cast %16 : vector<1x512xi1> to vector<1x512xi1>
    %47 = vector.broadcast %46 : vector<1x512xi1> to vector<4x512xi1>
    %48 = vector.broadcast %cst_24 : f32 to vector<4x512xf32>
    %49 = arith.select %47, %45, %48 : vector<4x512xi1>, vector<4x512xf32>
    %c20 = arith.constant 20 : index
    %c0_25 = arith.constant 0 : index
    %50 = vector.load %arg6[%c20, %c0_25] : memref<36x512xf32, #tpu.memory_space<vmem>>, vector<4x512xf32>
    tpu.vector_store %arg6[%c20, %c0_25], %49 {strides = array<i32>} : memref<36x512xf32, #tpu.memory_space<vmem>>, vector<4x512xf32>,
    %c0_26 = arith.constant 0 : index
    %c32 = arith.constant 32 : index
    %51 = vector.load %arg5[%c0_26, %c32] : memref<4x546xf32, #tpu.memory_space<vmem>>, vector<4x512xf32>
    %52 = arith.andi %12, %14 : vector<1x512xi1>
    %cst_27 = arith.constant 0.000000e+00 : f32
    %53 = vector.shape_cast %52 : vector<1x512xi1> to vector<1x512xi1>
    %54 = vector.broadcast %53 : vector<1x512xi1> to vector<4x512xi1>
    %55 = vector.broadcast %cst_27 : f32 to vector<4x512xf32>
    %56 = arith.select %54, %51, %55 : vector<4x512xi1>, vector<4x512xf32>
    %c24 = arith.constant 24 : index
    %c0_28 = arith.constant 0 : index
    %57 = vector.load %arg6[%c24, %c0_28] : memref<36x512xf32, #tpu.memory_space<vmem>>, vector<4x512xf32>
    tpu.vector_store %arg6[%c24, %c0_28], %56 {strides = array<i32>} : memref<36x512xf32, #tpu.memory_space<vmem>>, vector<4x512xf32>,
    %c0_29 = arith.constant 0 : index
    %c33 = arith.constant 33 : index
    %58 = vector.load %arg5[%c0_29, %c33] : memref<4x546xf32, #tpu.memory_space<vmem>>, vector<4x512xf32>
    %cst_30 = arith.constant 0.000000e+00 : f32
    %59 = vector.shape_cast %12 : vector<1x512xi1> to vector<1x512xi1>
    %60 = vector.broadcast %59 : vector<1x512xi1> to vector<4x512xi1>
    %61 = vector.broadcast %cst_30 : f32 to vector<4x512xf32>
    %62 = arith.select %60, %58, %61 : vector<4x512xi1>, vector<4x512xf32>
    %c28 = arith.constant 28 : index
    %c0_31 = arith.constant 0 : index
    %63 = vector.load %arg6[%c28, %c0_31] : memref<36x512xf32, #tpu.memory_space<vmem>>, vector<4x512xf32>
    tpu.vector_store %arg6[%c28, %c0_31], %62 {strides = array<i32>} : memref<36x512xf32, #tpu.memory_space<vmem>>, vector<4x512xf32>,
    %c0_32 = arith.constant 0 : index
    %c34 = arith.constant 34 : index
    %64 = vector.load %arg5[%c0_32, %c34] : memref<4x546xf32, #tpu.memory_space<vmem>>, vector<4x512xf32>
    %65 = arith.andi %12, %16 : vector<1x512xi1>
    %cst_33 = arith.constant 0.000000e+00 : f32
    %66 = vector.shape_cast %65 : vector<1x512xi1> to vector<1x512xi1>
    %67 = vector.broadcast %66 : vector<1x512xi1> to vector<4x512xi1>
    %68 = vector.broadcast %cst_33 : f32 to vector<4x512xf32>
    %69 = arith.select %67, %64, %68 : vector<4x512xi1>, vector<4x512xf32>
    %c32_34 = arith.constant 32 : index
    %c0_35 = arith.constant 0 : index
    %70 = vector.load %arg6[%c32_34, %c0_35] : memref<36x512xf32, #tpu.memory_space<vmem>>, vector<4x512xf32>
    tpu.vector_store %arg6[%c32_34, %c0_35], %69 {strides = array<i32>} : memref<36x512xf32, #tpu.memory_space<vmem>>, vector<4x512xf32>,
    %c0_36 = arith.constant 0 : index
    %c0_37 = arith.constant 0 : index
    %71 = vector.load %arg2[%c0_36, %c0_37] : memref<8x36xf32, #tpu.memory_space<vmem>>, vector<8x36xf32>
    %c0_38 = arith.constant 0 : index
    %c0_39 = arith.constant 0 : index
    %72 = vector.load %arg6[%c0_38, %c0_39] : memref<36x512xf32, #tpu.memory_space<vmem>>, vector<36x512xf32>
    %cst_40 = arith.constant dense<0.000000e+00> : vector<8x512xf32>
    %73 = tpu.matmul %71, %72, %cst_40 {dimension_numbers = #tpu.dot_dimension_numbers<[1], [0], [0], [1], [0, 0, 1, 1], [], []>} : vector<8x36xf32>, vector<36x512xf32>, vector<8x512xf32> -> vector<8x512xf32>
    %cst_41 = arith.constant dense<0.000000e+00> : vector<8xf32>
    %74 = vector.multi_reduction <add>, %73, %cst_41 [1] : vector<8x512xf32> to vector<8xf32>
    %75 = vector.shape_cast %74 : vector<8xf32> to vector<8x1xf32>
    %cst_42 = arith.constant 0.001953125 : f32
    %76 = vector.broadcast %cst_42 : f32 to vector<8x1xf32>
    %77 = arith.mulf %75, %76 : vector<8x1xf32>
    %78 = vector.broadcast %77 : vector<8x1xf32> to vector<8x512xf32>
    %79 = arith.subf %73, %78 : vector<8x512xf32>
    %80 = arith.mulf %79, %79 : vector<8x512xf32>
    %cst_43 = arith.constant dense<0.000000e+00> : vector<8xf32>
    %81 = vector.multi_reduction <add>, %80, %cst_43 [1] : vector<8x512xf32> to vector<8xf32>
    %82 = vector.shape_cast %81 : vector<8xf32> to vector<8x1xf32>
    %cst_44 = arith.constant 0.001953125 : f32
    %83 = vector.broadcast %cst_44 : f32 to vector<8x1xf32>
    %84 = arith.mulf %82, %83 : vector<8x1xf32>
    %c0_45 = arith.constant 0 : index
    %c0_46 = arith.constant 0 : index
    %85 = vector.load %arg3[%c0_45, %c0_46] : memref<8x2xf32, #tpu.memory_space<vmem>>, vector<8x1xf32>
    %c0_47 = arith.constant 0 : index
    %c1_48 = arith.constant 1 : index
    %86 = vector.load %arg3[%c0_47, %c1_48] : memref<8x2xf32, #tpu.memory_space<vmem>>, vector<8x1xf32>
    %cst_49 = arith.constant 9.99999974E-6 : f32
    %87 = vector.broadcast %cst_49 : f32 to vector<8x1xf32>
    %88 = arith.addf %84, %87 : vector<8x1xf32>
    %89 = math.rsqrt %88 : vector<8x1xf32>
    %90 = arith.mulf %85, %89 : vector<8x1xf32>
    %91 = vector.broadcast %90 : vector<8x1xf32> to vector<8x512xf32>
    %92 = arith.mulf %79, %91 : vector<8x512xf32>
    %93 = vector.broadcast %86 : vector<8x1xf32> to vector<8x512xf32>
    %94 = arith.addf %92, %93 : vector<8x512xf32>
    %cst_50 = arith.constant 0.000000e+00 : f32
    %95 = vector.broadcast %cst_50 : f32 to vector<8x512xf32>
    %96 = arith.cmpf oge, %94, %95 : vector<8x512xf32>
    %cst_51 = arith.constant 0.00999999977 : f32
    %97 = vector.broadcast %cst_51 : f32 to vector<8x512xf32>
    %98 = arith.mulf %97, %94 : vector<8x512xf32>
    %99 = arith.select %96, %94, %98 : vector<8x512xi1>, vector<8x512xf32>
    %c0_52 = arith.constant 0 : index
    %c0_53 = arith.constant 0 : index
    %100 = vector.load %arg4[%c0_52, %c0_53] : memref<8x512xf32, #tpu.memory_space<vmem>>, vector<8x512xf32>
    tpu.vector_store %arg4[%c0_52, %c0_53], %99 {strides = array<i32>} : memref<8x512xf32, #tpu.memory_space<vmem>>, vector<8x512xf32>,
    return
  }
  func.func @transform_0(%arg0: i32) -> (i32, i32) {
    %c0_i32 = arith.constant 0 : i32
    %c0_i32_0 = arith.constant 0 : i32
    %c0_i32_1 = arith.constant 0 : i32
    return %c0_i32, %c0_i32_0 : i32, i32
  }
  func.func @transform_1(%arg0: i32) -> (i32, i32) {
    %c0_i32 = arith.constant 0 : i32
    %c0_i32_0 = arith.constant 0 : i32
    %c0_i32_1 = arith.constant 0 : i32
    return %c0_i32, %c0_i32_0 : i32, i32
  }
  func.func @transform_2(%arg0: i32) -> (i32, i32) {
    %c0_i32 = arith.constant 0 : i32
    %c0_i32_0 = arith.constant 0 : i32
    %c0_i32_1 = arith.constant 0 : i32
    return %c0_i32, %c0_i32_0 : i32, i32
  }
  func.func @transform_3(%arg0: i32) -> (i32, i32) {
    %c0_i32 = arith.constant 0 : i32
    %c0_i32_0 = arith.constant 0 : i32
    %c0_i32_1 = arith.constant 0 : i32
    return %c0_i32, %c0_i32_0 : i32, i32
  }
}

</mosaic_0001>

<llo_original>
// kernel: tpu_custom_call.1
$region0: #{tpu_custom_call.1}
  #allocation0 [shape = 'u32[]', space=smem, size = 0x4, offset = 0x4, fixed_abs, tag = 'smem constant byte address 0x4 - core index']
  #allocation1 [shape = 'u32[144,128]{1,0:T(1,128)}', space=vmem, size = 0x12000, scoped, tag = 'internal scratch']
  #allocation2 [shape = 'f32[4,546]{1,0:T(4,128)}', space=vmem, size = 0x2800, scoped, tag = 'scratch operand']
  #allocation3 [shape = 'f32[36,512]{1,0:T(8,128)}', space=vmem, size = 0x14000, scoped, tag = 'scratch operand']
  %s0 = inlined_call_operand.hbm [shape: f32[4,512], index: 0, kind: input, shape index: {}]
  %s1 = inlined_call_operand.vmem [shape: f32[8,36], index: 1, kind: input, shape index: {}]
  %s2 = inlined_call_operand.vmem [shape: f32[8,2], index: 2, kind: input, shape index: {}]
  %s3 = inlined_call_operand.hbm [shape: f32[8,512], index: 3, kind: output, shape index: {}]
  %s4 = sld [smem:[#allocation0]]
  $region26: #{tpu_custom_call.1} parent=0
    _
  %s6 = ssub.s32 1, %s4
  %s7 = scalar_select 0, %s6, %s4
  $region1: #{tpu_custom_call.1} parent=0
    #allocation4 [shape = 'u8[8192]{0}', space=vmem, size = 0x2000, scoped, tag = 'input window, operand 0, single buffered']
    #allocation5 [shape = 's32[1]{0}', space=sflag, size = 0x4, scoped, tag = 'scoped memory for tpu_custom_call.1']
    #allocation6 [shape = 's32[1]{0}', space=sflag, size = 0x4, scoped, tag = 'scoped memory for tpu_custom_call.1']
    #allocation7 [shape = 'u8[16384]{0}', space=vmem, size = 0x4000, scoped, tag = 'output window, operand 0, single buffered']
    %8 = vsyncpa [#allocation5], 0
    %9 = vsyncpa [#allocation6], 0
    // Predicated region
    $region2: #{tpu_custom_call.1} parent=1 // pred_check
      _
    $region3: #{tpu_custom_call.1} parent=1 // pred_check_branch
      %11 = sbr.rel (0) target = $region5
    $region4: #{tpu_custom_call.1} parent=1 // pred_region
      %s13 = ssub.s32 256, 256
      %14 = vsyncadd [#allocation5], %s13
      %s16 = sshll.u32 [#allocation4], 4
      %s17 = int_to_ptr.vmem [resolvable:$true] %s16
      %19 = dma.hbm_to_vmem [thread:$0]  %s0, 256, %s17, [#allocation5]
    $region5: #{tpu_custom_call.1} parent=1 // pred_fallthru
      _
    // Predicated region
    $region6: #{tpu_custom_call.1} parent=1 // pred_check
      _
    $region7: #{tpu_custom_call.1} parent=1 // pred_check_branch
      %21 = sbr.rel (0) target = $region9
    $region8: #{tpu_custom_call.1} parent=1 // pred_region
      _
    $region9: #{tpu_custom_call.1} parent=1 // pred_fallthru
      _
    // Predicated region
    $region10: #{tpu_custom_call.1} parent=1 // pred_check
      _
    $region11: #{tpu_custom_call.1} parent=1 // pred_check_branch
      %23 = sbr.rel (0) target = $region13
    $region12: #{tpu_custom_call.1} parent=1 // pred_region
      _
    $region13: #{tpu_custom_call.1} parent=1 // pred_fallthru
      _
    // Predicated region
    $region14: #{tpu_custom_call.1} parent=1 // pred_check
      _
    $region15: #{tpu_custom_call.1} parent=1 // pred_check_branch
      %25 = sbr.rel (0) target = $region17
    $region16: #{tpu_custom_call.1} parent=1 // pred_region
      %26 = dma.done [#allocation5], 256
    $region17: #{tpu_custom_call.1} parent=1 // pred_fallthru
      _
    %27 = vst [vmem:[#allocation2] sm:$0xff] 0.0
    %28 = vst [vmem:[#allocation2 + $0x8] sm:$0xff] 0.0
    %vm29 = vcmask 273408
    %30 = vst.msk [vmem:[#allocation2 + $0x10] sm:$0xf] %vm29, 0.0
    %v31 = vld [vmem:[#allocation4] sm:$0xff]
    %v32 = vld [vmem:[#allocation4 + $0x8] sm:$0xff]
    %35 = vrot.lane.b32.xlu0 %v31, 17
    %v36 = vpop.permute.xlu0 %35
    %37 = vrot.lane.b32.xlu0 %v32, 17
    %v38 = vpop.permute.xlu0 %37
    %v39 = vrot.slane %v36, 4
    %v40 = vrot.slane %v38, 4
    %vm41 = vcmask 138240
    %v42 = vsel %vm41, %v39, %v36
    %vm43 = vcmask 1043456
    %v44 = vsel %vm43, %v39, %v40
    %v45 = vsel %vm41, %v44, %v38
    %vm49 = vcmask 1043592
    %vm50 = vcmask 1047556
    %vm51 = vmor %vm50, %vm49
    %52 = vst.msk [vmem:[#allocation2] sm:$0xff] %vm51, %v42
    %53 = vst [vmem:[#allocation2 + $0x8] sm:$0xff] %v45
    %vm54 = vcmask 134144
    %55 = vst.msk [vmem:[#allocation2 + $0x10] sm:$0xf] %vm54, %v40
    %v56 = vlaneseq
    %v57 = vand.u32 %v56, 127
    %v58 = vadd.s32 %v57, 128
    %v59 = vadd.s32 %v57, 256
    %v60 = vadd.s32 %v57, 384
    %v61 = vand.u32 %v57, 255
    %v62 = vand.u32 %v58, 255
    %v63 = vand.u32 %v59, 255
    %v64 = vand.u32 %v60, 255
    %v65 = vand.u32 %v57, 15
    %v66 = vand.u32 %v58, 15
    %v67 = vand.u32 %v59, 15
    %v68 = vand.u32 %v60, 15
    %vm69 = vcmp.ge.s32.totalorder %v61, 16
    %vm70 = vcmp.ge.s32.totalorder %v62, 16
    %vm71 = vcmp.ge.s32.totalorder %v63, 16
    %vm72 = vcmp.ge.s32.totalorder %v64, 16
    %vm73 = vcmp.lt.s32.totalorder %v61, 240
    %vm74 = vcmp.lt.s32.totalorder %v62, 240
    %vm75 = vcmp.lt.s32.totalorder %v63, 240
    %vm76 = vcmp.lt.s32.totalorder %v64, 240
    %vm77 = vcmp.ge.s32.totalorder %v65, 1
    %vm78 = vcmp.ge.s32.totalorder %v66, 1
    %vm79 = vcmp.ge.s32.totalorder %v67, 1
    %vm80 = vcmp.ge.s32.totalorder %v68, 1
    %vm81 = vcmp.lt.s32.totalorder %v65, 15
    %vm82 = vcmp.lt.s32.totalorder %v66, 15
    %vm83 = vcmp.lt.s32.totalorder %v67, 15
    %vm84 = vcmp.lt.s32.totalorder %v68, 15
    %v85 = vld [vmem:[#allocation2] sm:$0xff]
    %v86 = vld [vmem:[#allocation2 + $0x8] sm:$0xff]
    %vm87 = vmand %vm69, %vm77
    %vm88 = vmand %vm70, %vm78
    %vm89 = vmand %vm71, %vm79
    %vm90 = vmand %vm72, %vm80
    %v91 = vsel %vm87, 1, 0
    %v92 = vsel %vm88, 1, 0
    %v93 = vsel %vm89, 1, 0
    %v94 = vsel %vm90, 1, 0
    %vm95 = vcmp.eq.s32.totalorder %v91, 1
    %vm96 = vcmp.eq.s32.totalorder %v92, 1
    %vm97 = vcmp.eq.s32.totalorder %v93, 1
    %vm98 = vcmp.eq.s32.totalorder %v94, 1
    %v101 = vcombine.high %v85, %v85
    %v102 = vcombine.high %v86, %v86
    %v105 = vsel %vm95, %v85, 0.0
    %v106 = vsel %vm96, %v101, 0.0
    %v107 = vsel %vm97, %v86, 0.0
    %v108 = vsel %vm98, %v102, 0.0
    %109 = vst [vmem:[#allocation3] sm:$0xf] %v105
    %110 = vst [vmem:[#allocation3 + $0x8] sm:$0xf] %v106
    %111 = vst [vmem:[#allocation3 + $0x10] sm:$0xf] %v107
    %112 = vst [vmem:[#allocation3 + $0x18] sm:$0xf] %v108
    %v113 = vld [vmem:[#allocation2] sm:$0xff]
    %v114 = vld [vmem:[#allocation2 + $0x8] sm:$0xff]
    %v115 = vld [vmem:[#allocation2 + $0x10] sm:$0xf]
    %v116 = vsel %vm69, 1, 0
    %v117 = vsel %vm70, 1, 0
    %v118 = vsel %vm71, 1, 0
    %v119 = vsel %vm72, 1, 0
    %vm120 = vcmp.eq.s32.totalorder %v116, 1
    %vm121 = vcmp.eq.s32.totalorder %v117, 1
    %vm122 = vcmp.eq.s32.totalorder %v118, 1
    %vm123 = vcmp.eq.s32.totalorder %v119, 1
    %v127 = vcombine.high %v113, %v113
    %v128 = vcombine.high %v114, %v114
    %129 = vrot.lane.b32.xlu0 %v113, 127
    %v130 = vpop.permute.xlu0 %129
    %131 = vrot.lane.b32.xlu0 %v127, 127
    %v132 = vpop.permute.xlu0 %131
    %133 = vrot.lane.b32.xlu0 %v114, 127
    %v134 = vpop.permute.xlu0 %133
    %135 = vrot.lane.b32.xlu0 %v128, 127
    %v136 = vpop.permute.xlu0 %135
    %137 = vrot.lane.b32.xlu0 %v115, 127
    %v138 = vpop.permute.xlu0 %137
    %vm139 = vcmask 1039360
    %v140 = vsel %vm139, %v130, %v132
    %v141 = vsel %vm139, %v132, %v134
    %v142 = vsel %vm139, %v134, %v136
    %v143 = vsel %vm139, %v136, %v138
    %v148 = vsel %vm120, %v140, 0.0
    %v149 = vsel %vm121, %v141, 0.0
    %v150 = vsel %vm122, %v142, 0.0
    %v151 = vsel %vm123, %v143, 0.0
    %v156 = vrot.slane %v148, 4
    %v157 = vrot.slane %v149, 4
    %v158 = vrot.slane %v150, 4
    %v159 = vrot.slane %v151, 4
    %164 = vst [vmem:[#allocation3] sm:$0xf0] %v156
    %165 = vst [vmem:[#allocation3 + $0x8] sm:$0xf0] %v157
    %166 = vst [vmem:[#allocation3 + $0x10] sm:$0xf0] %v158
    %167 = vst [vmem:[#allocation3 + $0x18] sm:$0xf0] %v159
    %v168 = vld [vmem:[#allocation2] sm:$0xff]
    %v169 = vld [vmem:[#allocation2 + $0x8] sm:$0xff]
    %v170 = vld [vmem:[#allocation2 + $0x10] sm:$0xf]
    %vm171 = vmand %vm69, %vm81
    %vm172 = vmand %vm70, %vm82
    %vm173 = vmand %vm71, %vm83
    %vm174 = vmand %vm72, %vm84
    %v175 = vsel %vm171, 1, 0
    %v176 = vsel %vm172, 1, 0
    %v177 = vsel %vm173, 1, 0
    %v178 = vsel %vm174, 1, 0
    %vm179 = vcmp.eq.s32.totalorder %v175, 1
    %vm180 = vcmp.eq.s32.totalorder %v176, 1
    %vm181 = vcmp.eq.s32.totalorder %v177, 1
    %vm182 = vcmp.eq.s32.totalorder %v178, 1
    %v186 = vcombine.high %v168, %v168
    %v187 = vcombine.high %v169, %v169
    %188 = vrot.lane.b32.xlu0 %v168, 126
    %v189 = vpop.permute.xlu0 %188
    %190 = vrot.lane.b32.xlu0 %v186, 126
    %v191 = vpop.permute.xlu0 %190
    %192 = vrot.lane.b32.xlu0 %v169, 126
    %v193 = vpop.permute.xlu0 %192
    %194 = vrot.lane.b32.xlu0 %v187, 126
    %v195 = vpop.permute.xlu0 %194
    %196 = vrot.lane.b32.xlu0 %v170, 126
    %v197 = vpop.permute.xlu0 %196
    %vm198 = vcmask 1031168
    %v199 = vsel %vm198, %v189, %v191
    %v200 = vsel %vm198, %v191, %v193
    %v201 = vsel %vm198, %v193, %v195
    %v202 = vsel %vm198, %v195, %v197
    %v207 = vsel %vm179, %v199, 0.0
    %v208 = vsel %vm180, %v200, 0.0
    %v209 = vsel %vm181, %v201, 0.0
    %v210 = vsel %vm182, %v202, 0.0
    %211 = vst [vmem:[#allocation3 + $0x20] sm:$0xf] %v207
    %212 = vst [vmem:[#allocation3 + $0x28] sm:$0xf] %v208
    %213 = vst [vmem:[#allocation3 + $0x30] sm:$0xf] %v209
    %214 = vst [vmem:[#allocation3 + $0x38] sm:$0xf] %v210
    %v215 = vld [vmem:[#allocation2] sm:$0xff]
    %v216 = vld [vmem:[#allocation2 + $0x8] sm:$0xff]
    %v217 = vld [vmem:[#allocation2 + $0x10] sm:$0xf]
    %v218 = vsel %vm77, 1, 0
    %v219 = vsel %vm78, 1, 0
    %v220 = vsel %vm79, 1, 0
    %v221 = vsel %vm80, 1, 0
    %vm222 = vcmp.eq.s32.totalorder %v218, 1
    %vm223 = vcmp.eq.s32.totalorder %v219, 1
    %vm224 = vcmp.eq.s32.totalorder %v220, 1
    %vm225 = vcmp.eq.s32.totalorder %v221, 1
    %v229 = vcombine.high %v215, %v215
    %v230 = vcombine.high %v216, %v216
    %231 = vrot.lane.b32.xlu0 %v215, 112
    %v232 = vpop.permute.xlu0 %231
    %233 = vrot.lane.b32.xlu0 %v229, 112
    %v234 = vpop.permute.xlu0 %233
    %235 = vrot.lane.b32.xlu0 %v216, 112
    %v236 = vpop.permute.xlu0 %235
    %237 = vrot.lane.b32.xlu0 %v230, 112
    %v238 = vpop.permute.xlu0 %237
    %239 = vrot.lane.b32.xlu0 %v217, 112
    %v240 = vpop.permute.xlu0 %239
    %vm241 = vcmask 916480
    %v242 = vsel %vm241, %v232, %v234
    %v243 = vsel %vm241, %v234, %v236
    %v244 = vsel %vm241, %v236, %v238
    %v245 = vsel %vm241, %v238, %v240
    %v250 = vsel %vm222, %v242, 0.0
    %v251 = vsel %vm223, %v243, 0.0
    %v252 = vsel %vm224, %v244, 0.0
    %v253 = vsel %vm225, %v245, 0.0
    %v258 = vrot.slane %v250, 4
    %v259 = vrot.slane %v251, 4
    %v260 = vrot.slane %v252, 4
    %v261 = vrot.slane %v253, 4
    %266 = vst [vmem:[#allocation3 + $0x20] sm:$0xf0] %v258
    %267 = vst [vmem:[#allocation3 + $0x28] sm:$0xf0] %v259
    %268 = vst [vmem:[#allocation3 + $0x30] sm:$0xf0] %v260
    %269 = vst [vmem:[#allocation3 + $0x38] sm:$0xf0] %v261
    %v270 = vld [vmem:[#allocation2] sm:$0xff]
    %v271 = vld [vmem:[#allocation2 + $0x8] sm:$0xff]
    %v272 = vld [vmem:[#allocation2 + $0x10] sm:$0xf]
    %v276 = vcombine.high %v270, %v270
    %v277 = vcombine.high %v271, %v271
    %278 = vrot.lane.b32.xlu0 %v270, 111
    %v279 = vpop.permute.xlu0 %278
    %280 = vrot.lane.b32.xlu0 %v276, 111
    %v281 = vpop.permute.xlu0 %280
    %282 = vrot.lane.b32.xlu0 %v271, 111
    %v283 = vpop.permute.xlu0 %282
    %284 = vrot.lane.b32.xlu0 %v277, 111
    %v285 = vpop.permute.xlu0 %284
    %286 = vrot.lane.b32.xlu0 %v272, 111
    %v287 = vpop.permute.xlu0 %286
    %vm288 = vcmask 908288
    %v289 = vsel %vm288, %v279, %v281
    %v290 = vsel %vm288, %v281, %v283
    %v291 = vsel %vm288, %v283, %v285
    %v292 = vsel %vm288, %v285, %v287
    %297 = vst [vmem:[#allocation3 + $0x40] sm:$0xf] %v289
    %298 = vst [vmem:[#allocation3 + $0x48] sm:$0xf] %v290
    %299 = vst [vmem:[#allocation3 + $0x50] sm:$0xf] %v291
    %300 = vst [vmem:[#allocation3 + $0x58] sm:$0xf] %v292
    %v301 = vld [vmem:[#allocation2] sm:$0xff]
    %v302 = vld [vmem:[#allocation2 + $0x8] sm:$0xff]
    %v303 = vld [vmem:[#allocation2 + $0x10] sm:$0xf]
    %v304 = vsel %vm81, 1, 0
    %v305 = vsel %vm82, 1, 0
    %v306 = vsel %vm83, 1, 0
    %v307 = vsel %vm84, 1, 0
    %vm308 = vcmp.eq.s32.totalorder %v304, 1
    %vm309 = vcmp.eq.s32.totalorder %v305, 1
    %vm310 = vcmp.eq.s32.totalorder %v306, 1
    %vm311 = vcmp.eq.s32.totalorder %v307, 1
    %v315 = vcombine.high %v301, %v301
    %v316 = vcombine.high %v302, %v302
    %317 = vrot.lane.b32.xlu0 %v301, 110
    %v318 = vpop.permute.xlu0 %317
    %319 = vrot.lane.b32.xlu0 %v315, 110
    %v320 = vpop.permute.xlu0 %319
    %321 = vrot.lane.b32.xlu0 %v302, 110
    %v322 = vpop.permute.xlu0 %321
    %323 = vrot.lane.b32.xlu0 %v316, 110
    %v324 = vpop.permute.xlu0 %323
    %325 = vrot.lane.b32.xlu0 %v303, 110
    %v326 = vpop.permute.xlu0 %325
    %vm327 = vcmask 900096
    %v328 = vsel %vm327, %v318, %v320
    %v329 = vsel %vm327, %v320, %v322
    %v330 = vsel %vm327, %v322, %v324
    %v331 = vsel %vm327, %v324, %v326
    %v336 = vsel %vm308, %v328, 0.0
    %v337 = vsel %vm309, %v329, 0.0
    %v338 = vsel %vm310, %v330, 0.0
    %v339 = vsel %vm311, %v331, 0.0
    %v344 = vrot.slane %v336, 4
    %v345 = vrot.slane %v337, 4
    %v346 = vrot.slane %v338, 4
    %v347 = vrot.slane %v339, 4
    %352 = vst [vmem:[#allocation3 + $0x40] sm:$0xf0] %v344
    %353 = vst [vmem:[#allocation3 + $0x48] sm:$0xf0] %v345
    %354 = vst [vmem:[#allocation3 + $0x50] sm:$0xf0] %v346
    %355 = vst [vmem:[#allocation3 + $0x58] sm:$0xf0] %v347
    %v356 = vld [vmem:[#allocation2] sm:$0xff]
    %v357 = vld [vmem:[#allocation2 + $0x8] sm:$0xff]
    %v358 = vld [vmem:[#allocation2 + $0x10] sm:$0xf]
    %vm359 = vmand %vm73, %vm77
    %vm360 = vmand %vm74, %vm78
    %vm361 = vmand %vm75, %vm79
    %vm362 = vmand %vm76, %vm80
    %v363 = vsel %vm359, 1, 0
    %v364 = vsel %vm360, 1, 0
    %v365 = vsel %vm361, 1, 0
    %v366 = vsel %vm362, 1, 0
    %vm367 = vcmp.eq.s32.totalorder %v363, 1
    %vm368 = vcmp.eq.s32.totalorder %v364, 1
    %vm369 = vcmp.eq.s32.totalorder %v365, 1
    %vm370 = vcmp.eq.s32.totalorder %v366, 1
    %v374 = vcombine.high %v356, %v356
    %v375 = vcombine.high %v357, %v357
    %376 = vrot.lane.b32.xlu0 %v356, 96
    %v377 = vpop.permute.xlu0 %376
    %378 = vrot.lane.b32.xlu0 %v374, 96
    %v379 = vpop.permute.xlu0 %378
    %380 = vrot.lane.b32.xlu0 %v357, 96
    %v381 = vpop.permute.xlu0 %380
    %382 = vrot.lane.b32.xlu0 %v375, 96
    %v383 = vpop.permute.xlu0 %382
    %384 = vrot.lane.b32.xlu0 %v358, 96
    %v385 = vpop.permute.xlu0 %384
    %vm386 = vcmask 785408
    %v387 = vsel %vm386, %v377, %v379
    %v388 = vsel %vm386, %v379, %v381
    %v389 = vsel %vm386, %v381, %v383
    %v390 = vsel %vm386, %v383, %v385
    %v395 = vsel %vm367, %v387, 0.0
    %v396 = vsel %vm368, %v388, 0.0
    %v397 = vsel %vm369, %v389, 0.0
    %v398 = vsel %vm370, %v390, 0.0
    %399 = vst [vmem:[#allocation3 + $0x60] sm:$0xf] %v395
    %400 = vst [vmem:[#allocation3 + $0x68] sm:$0xf] %v396
    %401 = vst [vmem:[#allocation3 + $0x70] sm:$0xf] %v397
    %402 = vst [vmem:[#allocation3 + $0x78] sm:$0xf] %v398
    %v403 = vld [vmem:[#allocation2] sm:$0xff]
    %v404 = vld [vmem:[#allocation2 + $0x8] sm:$0xff]
    %v405 = vld [vmem:[#allocation2 + $0x10] sm:$0xf]
    %v406 = vsel %vm73, 1, 0
    %v407 = vsel %vm74, 1, 0
    %v408 = vsel %vm75, 1, 0
    %v409 = vsel %vm76, 1, 0
    %vm410 = vcmp.eq.s32.totalorder %v406, 1
    %vm411 = vcmp.eq.s32.totalorder %v407, 1
    %vm412 = vcmp.eq.s32.totalorder %v408, 1
    %vm413 = vcmp.eq.s32.totalorder %v409, 1
    %v417 = vcombine.high %v403, %v403
    %v418 = vcombine.high %v404, %v404
    %419 = vrot.lane.b32.xlu0 %v403, 95
    %v420 = vpop.permute.xlu0 %419
    %421 = vrot.lane.b32.xlu0 %v417, 95
    %v422 = vpop.permute.xlu0 %421
    %423 = vrot.lane.b32.xlu0 %v404, 95
    %v424 = vpop.permute.xlu0 %423
    %425 = vrot.lane.b32.xlu0 %v418, 95
    %v426 = vpop.permute.xlu0 %425
    %427 = vrot.lane.b32.xlu0 %v405, 95
    %v428 = vpop.permute.xlu0 %427
    %vm429 = vcmask 777216
    %v430 = vsel %vm429, %v420, %v422
    %v431 = vsel %vm429, %v422, %v424
    %v432 = vsel %vm429, %v424, %v426
    %v433 = vsel %vm429, %v426, %v428
    %v438 = vsel %vm410, %v430, 0.0
    %v439 = vsel %vm411, %v431, 0.0
    %v440 = vsel %vm412, %v432, 0.0
    %v441 = vsel %vm413, %v433, 0.0
    %v446 = vrot.slane %v438, 4
    %v447 = vrot.slane %v439, 4
    %v448 = vrot.slane %v440, 4
    %v449 = vrot.slane %v441, 4
    %454 = vst [vmem:[#allocation3 + $0x60] sm:$0xf0] %v446
    %455 = vst [vmem:[#allocation3 + $0x68] sm:$0xf0] %v447
    %456 = vst [vmem:[#allocation3 + $0x70] sm:$0xf0] %v448
    %457 = vst [vmem:[#allocation3 + $0x78] sm:$0xf0] %v449
    %v458 = vld [vmem:[#allocation2] sm:$0xff]
    %v459 = vld [vmem:[#allocation2 + $0x8] sm:$0xff]
    %v460 = vld [vmem:[#allocation2 + $0x10] sm:$0xf]
    %vm461 = vmand %vm73, %vm81
    %vm462 = vmand %vm74, %vm82
    %vm463 = vmand %vm75, %vm83
    %vm464 = vmand %vm76, %vm84
    %v465 = vsel %vm461, 1, 0
    %v466 = vsel %vm462, 1, 0
    %v467 = vsel %vm463, 1, 0
    %v468 = vsel %vm464, 1, 0
    %vm469 = vcmp.eq.s32.totalorder %v465, 1
    %vm470 = vcmp.eq.s32.totalorder %v466, 1
    %vm471 = vcmp.eq.s32.totalorder %v467, 1
    %vm472 = vcmp.eq.s32.totalorder %v468, 1
    %v476 = vcombine.high %v458, %v458
    %v477 = vcombine.high %v459, %v459
    %478 = vrot.lane.b32.xlu0 %v458, 94
    %v479 = vpop.permute.xlu0 %478
    %480 = vrot.lane.b32.xlu0 %v476, 94
    %v481 = vpop.permute.xlu0 %480
    %482 = vrot.lane.b32.xlu0 %v459, 94
    %v483 = vpop.permute.xlu0 %482
    %484 = vrot.lane.b32.xlu0 %v477, 94
    %v485 = vpop.permute.xlu0 %484
    %486 = vrot.lane.b32.xlu0 %v460, 94
    %v487 = vpop.permute.xlu0 %486
    %vm488 = vcmask 769024
    %v489 = vsel %vm488, %v479, %v481
    %v490 = vsel %vm488, %v481, %v483
    %v491 = vsel %vm488, %v483, %v485
    %v492 = vsel %vm488, %v485, %v487
    %v497 = vsel %vm469, %v489, 0.0
    %v498 = vsel %vm470, %v490, 0.0
    %v499 = vsel %vm471, %v491, 0.0
    %v500 = vsel %vm472, %v492, 0.0
    %501 = vst [vmem:[#allocation3 + $0x80] sm:$0xf] %v497
    %502 = vst [vmem:[#allocation3 + $0x88] sm:$0xf] %v498
    %503 = vst [vmem:[#allocation3 + $0x90] sm:$0xf] %v499
    %504 = vst [vmem:[#allocation3 + $0x98] sm:$0xf] %v500
    %v505 = vld [vmem:[%s1] sm:$0xff]
    %v506 = vld [vmem:[#allocation3] sm:$0xff]
    %v507 = vld [vmem:[#allocation3 + $0x8] sm:$0xff]
    %v508 = vld [vmem:[#allocation3 + $0x10] sm:$0xff]
    %v509 = vld [vmem:[#allocation3 + $0x18] sm:$0xff]
    %v510 = vld [vmem:[#allocation3 + $0x20] sm:$0xff]
    %v511 = vld [vmem:[#allocation3 + $0x28] sm:$0xff]
    %v512 = vld [vmem:[#allocation3 + $0x30] sm:$0xff]
    %v513 = vld [vmem:[#allocation3 + $0x38] sm:$0xff]
    %v514 = vld [vmem:[#allocation3 + $0x40] sm:$0xff]
    %v515 = vld [vmem:[#allocation3 + $0x48] sm:$0xff]
    %v516 = vld [vmem:[#allocation3 + $0x50] sm:$0xff]
    %v517 = vld [vmem:[#allocation3 + $0x58] sm:$0xff]
    %v518 = vld [vmem:[#allocation3 + $0x60] sm:$0xff]
    %v519 = vld [vmem:[#allocation3 + $0x68] sm:$0xff]
    %v520 = vld [vmem:[#allocation3 + $0x70] sm:$0xff]
    %v521 = vld [vmem:[#allocation3 + $0x78] sm:$0xff]
    %v522 = vld [vmem:[#allocation3 + $0x80] sm:$0xf]
    %v523 = vld [vmem:[#allocation3 + $0x88] sm:$0xf]
    %v524 = vld [vmem:[#allocation3 + $0x90] sm:$0xf]
    %v525 = vld [vmem:[#allocation3 + $0x98] sm:$0xf]
    %vm526 = vcmask 293888
    %v528 = vsel %vm526, %v505, 0
    %v531 = vsel %vm43, %v522, 0
    %v534 = vsel %vm43, %v523, 0
    %v537 = vsel %vm43, %v524, 0
    %v540 = vsel %vm43, %v525, 0
    %542 = vmatprep.subr.mxu0 0.0
    %543 = vmatpush1.msra.mxu0 0.0
    %544 = vmatprep.subr.mxu0 0.0
    %545 = vmatpush1.msra.mxu0 0.0
    %546 = vmatprep.subr.mxu0 0.0
    %547 = vmatpush1.msra.mxu0 0.0
    %548 = vmatprep.subr.mxu0 0.0
    %549 = vmatpush1.msra.mxu0 0.0
    %550 = vmatprep.subr.mxu0 0.0
    %551 = vmatpush1.msra.mxu0 0.0
    %552 = vmatprep.subr.mxu0 0.0
    %553 = vmatpush1.msra.mxu0 0.0
    %554 = vmatprep.subr.mxu0 0.0
    %555 = vmatpush1.msra.mxu0 0.0
    %556 = vmatprep.subr.mxu0 0.0
    %557 = vmatpush1.msra.mxu0 0.0
    %558 = vmatprep.subr.mxu0 0.0
    %559 = vmatpush1.msra.mxu0 0.0
    %560 = vmatprep.subr.mxu0 0.0
    %561 = vmatpush1.msra.mxu0 0.0
    %562 = vmatprep.subr.mxu0 0.0
    %563 = vmatpush1.msra.mxu0 0.0
    %564 = vmatprep.subr.mxu0 %v534
    %565 = vmatpush1.msra.mxu0 %v531
    %566 = vmatprep.subr.mxu0 %v519
    %567 = vmatpush1.msra.mxu0 %v518
    %568 = vmatprep.subr.mxu0 %v515
    %569 = vmatpush1.msra.mxu0 %v514
    %570 = vmatprep.subr.mxu0 %v511
    %571 = vmatpush1.msra.mxu0 %v510
    %572 = vmatprep.subr.mxu0 %v507
    %573 = vmatpush1.msra.mxu0 %v506
    %574 = vmatprep.subr.mxu0 0.0
    %575 = vmatpush2.msra.mxu0 0.0
    %576 = vmatprep.subr.mxu0 0.0
    %577 = vmatpush2.msra.mxu0 0.0
    %578 = vmatprep.subr.mxu0 0.0
    %579 = vmatpush2.msra.mxu0 0.0
    %580 = vmatprep.subr.mxu0 0.0
    %581 = vmatpush2.msra.mxu0 0.0
    %582 = vmatprep.subr.mxu0 0.0
    %583 = vmatpush2.msra.mxu0 0.0
    %584 = vmatprep.subr.mxu0 0.0
    %585 = vmatpush2.msra.mxu0 0.0
    %586 = vmatprep.subr.mxu0 0.0
    %587 = vmatpush2.msra.mxu0 0.0
    %588 = vmatprep.subr.mxu0 0.0
    %589 = vmatpush2.msra.mxu0 0.0
    %590 = vmatprep.subr.mxu0 0.0
    %591 = vmatpush2.msra.mxu0 0.0
    %592 = vmatprep.subr.mxu0 0.0
    %593 = vmatpush2.msra.mxu0 0.0
    %594 = vmatprep.subr.mxu0 0.0
    %595 = vmatpush2.msra.mxu0 0.0
    %596 = vmatprep.subr.mxu0 0.0
    %597 = vmatpush2.msra.mxu0 0.0
    %598 = vmatprep.subr.mxu0 0.0
    %599 = vmatpush2.msra.mxu0 0.0
    %600 = vmatprep.subr.mxu0 0.0
    %601 = vmatpush2.msra.mxu0 0.0
    %602 = vmatprep.subr.mxu0 0.0
    %603 = vmatpush2.msra.mxu0 0.0
    %604 = vmatprep.subr.mxu0 0.0
    %605 = vmatpush2.msra.mxu0 0.0
    %606 = vmatprep.mubr.f32.mxu0 0.0
    %607 = vmatmul.mubr.f32.gmra.mxu0 %v528
    %v608 = vpop.f32.mrf.mxu0
    %v609 = vadd.f32 0.0, %v608
    %v610 = vpop.f32.mrf.mxu0
    %v611 = vadd.f32 0.0, %v610
    %612 = vdwg.mxu0
    %613 = vmatprep.subr.mxu0 0.0
    %614 = vmatpush1.msra.mxu0 0.0
    %615 = vmatprep.subr.mxu0 0.0
    %616 = vmatpush1.msra.mxu0 0.0
    %617 = vmatprep.subr.mxu0 0.0
    %618 = vmatpush1.msra.mxu0 0.0
    %619 = vmatprep.subr.mxu0 0.0
    %620 = vmatpush1.msra.mxu0 0.0
    %621 = vmatprep.subr.mxu0 0.0
    %622 = vmatpush1.msra.mxu0 0.0
    %623 = vmatprep.subr.mxu0 0.0
    %624 = vmatpush1.msra.mxu0 0.0
    %625 = vmatprep.subr.mxu0 0.0
    %626 = vmatpush1.msra.mxu0 0.0
    %627 = vmatprep.subr.mxu0 0.0
    %628 = vmatpush1.msra.mxu0 0.0
    %629 = vmatprep.subr.mxu0 0.0
    %630 = vmatpush1.msra.mxu0 0.0
    %631 = vmatprep.subr.mxu0 0.0
    %632 = vmatpush1.msra.mxu0 0.0
    %633 = vmatprep.subr.mxu0 0.0
    %634 = vmatpush1.msra.mxu0 0.0
    %635 = vmatprep.subr.mxu0 %v540
    %636 = vmatpush1.msra.mxu0 %v537
    %637 = vmatprep.subr.mxu0 %v521
    %638 = vmatpush1.msra.mxu0 %v520
    %639 = vmatprep.subr.mxu0 %v517
    %640 = vmatpush1.msra.mxu0 %v516
    %641 = vmatprep.subr.mxu0 %v513
    %642 = vmatpush1.msra.mxu0 %v512
    %643 = vmatprep.subr.mxu0 %v509
    %644 = vmatpush1.msra.mxu0 %v508
    %645 = vmatprep.subr.mxu0 0.0
    %646 = vmatpush2.msra.mxu0 0.0
    %647 = vmatprep.subr.mxu0 0.0
    %648 = vmatpush2.msra.mxu0 0.0
    %649 = vmatprep.subr.mxu0 0.0
    %650 = vmatpush2.msra.mxu0 0.0
    %651 = vmatprep.subr.mxu0 0.0
    %652 = vmatpush2.msra.mxu0 0.0
    %653 = vmatprep.subr.mxu0 0.0
    %654 = vmatpush2.msra.mxu0 0.0
    %655 = vmatprep.subr.mxu0 0.0
    %656 = vmatpush2.msra.mxu0 0.0
    %657 = vmatprep.subr.mxu0 0.0
    %658 = vmatpush2.msra.mxu0 0.0
    %659 = vmatprep.subr.mxu0 0.0
    %660 = vmatpush2.msra.mxu0 0.0
    %661 = vmatprep.subr.mxu0 0.0
    %662 = vmatpush2.msra.mxu0 0.0
    %663 = vmatprep.subr.mxu0 0.0
    %664 = vmatpush2.msra.mxu0 0.0
    %665 = vmatprep.subr.mxu0 0.0
    %666 = vmatpush2.msra.mxu0 0.0
    %667 = vmatprep.subr.mxu0 0.0
    %668 = vmatpush2.msra.mxu0 0.0
    %669 = vmatprep.subr.mxu0 0.0
    %670 = vmatpush2.msra.mxu0 0.0
    %671 = vmatprep.subr.mxu0 0.0
    %672 = vmatpush2.msra.mxu0 0.0
    %673 = vmatprep.subr.mxu0 0.0
    %674 = vmatpush2.msra.mxu0 0.0
    %675 = vmatprep.subr.mxu0 0.0
    %676 = vmatpush2.msra.mxu0 0.0
    %677 = vmatprep.mubr.f32.mxu0 0.0
    %678 = vmatmul.mubr.f32.gmra.mxu0 %v528
    %v679 = vpop.f32.mrf.mxu0
    %v680 = vadd.f32 0.0, %v679
    %v681 = vpop.f32.mrf.mxu0
    %v682 = vadd.f32 0.0, %v681
    %683 = vdwg.mxu0
    %v684 = vadd.f32 %v609, %v611
    %v685 = vadd.f32 %v684, %v680
    %v686 = vadd.f32 %v685, %v682
    %687 = vadd.xlane.f32.xlu0 %v686
    %v688 = vpop.xlane.xlu0 %687
    %v689 = vmul.f32 %v688, 0.001953125
    %v690 = vsub.f32 %v609, %v689
    %v691 = vsub.f32 %v611, %v689
    %v692 = vsub.f32 %v680, %v689
    %v693 = vsub.f32 %v682, %v689
    %v694 = vmul.f32 %v690, %v690
    %v695 = vmul.f32 %v691, %v691
    %v696 = vmul.f32 %v692, %v692
    %v697 = vmul.f32 %v693, %v693
    %v698 = vadd.f32 %v694, %v695
    %v699 = vadd.f32 %v698, %v696
    %v700 = vadd.f32 %v699, %v697
    %701 = vadd.xlane.f32.xlu0 %v700
    %v702 = vpop.xlane.xlu0 %701
    %v703 = vmul.f32 %v702, 0.001953125
    %v704 = vld [vmem:[%s2] sm:$0xff]
    %v705 = vadd.f32 %v703, 1e-05
    %v706 = vrsqrt.pop %v705
    %v707 = vmul.f32 %v704, %v706
    %709 = vset.pattern.permute.xlu0 0
    %710 = vperm.xlu0 %709, %v707
    %v711 = vpop.permute.xlu0 %710
    %v713 = vmul.f32 %v690, %v711
    %v714 = vmul.f32 %v691, %v711
    %v715 = vmul.f32 %v692, %v711
    %v716 = vmul.f32 %v693, %v711
    %718 = vset.pattern.permute.xlu0 1
    %719 = vperm.xlu0 %718, %v704
    %v720 = vpop.permute.xlu0 %719
    %v722 = vadd.f32 %v713, %v720
    %v723 = vadd.f32 %v714, %v720
    %v724 = vadd.f32 %v715, %v720
    %v725 = vadd.f32 %v716, %v720
    %vm726 = vcmp.ge.f32.partialorder %v722, 0.0
    %vm727 = vcmp.ge.f32.partialorder %v723, 0.0
    %vm728 = vcmp.ge.f32.partialorder %v724, 0.0
    %vm729 = vcmp.ge.f32.partialorder %v725, 0.0
    %v730 = vmul.f32 %v722, 0.01
    %v731 = vmul.f32 %v723, 0.01
    %v732 = vmul.f32 %v724, 0.01
    %v733 = vmul.f32 %v725, 0.01
    %v734 = vsel %vm726, %v722, %v730
    %v735 = vsel %vm727, %v723, %v731
    %v736 = vsel %vm728, %v724, %v732
    %v737 = vsel %vm729, %v725, %v733
    %738 = vst [vmem:[#allocation7] sm:$0xff] %v734
    %739 = vst [vmem:[#allocation7 + $0x8] sm:$0xff] %v735
    %740 = vst [vmem:[#allocation7 + $0x10] sm:$0xff] %v736
    %741 = vst [vmem:[#allocation7 + $0x18] sm:$0xff] %v737
    // Predicated region
    $region18: #{tpu_custom_call.1} parent=1 // pred_check
      _
    $region19: #{tpu_custom_call.1} parent=1 // pred_check_branch
      %743 = sbr.rel (0) target = $region21
    $region20: #{tpu_custom_call.1} parent=1 // pred_region
      %s745 = ssub.s32 512, 512
      %746 = vsyncadd [#allocation6], %s745
      %s748 = sshll.u32 [#allocation7], 4
      %s749 = int_to_ptr.vmem [resolvable:$true] %s748
      %751 = dma.vmem_to_hbm [thread:$0]  %s749, 512, %s3, [#allocation6]
    $region21: #{tpu_custom_call.1} parent=1 // pred_fallthru
      _
    // Predicated region
    $region22: #{tpu_custom_call.1} parent=1 // pred_check
      _
    $region23: #{tpu_custom_call.1} parent=1 // pred_check_branch
      %753 = sbr.rel (0) target = $region25
    $region24: #{tpu_custom_call.1} parent=1 // pred_region
      %754 = dma.done [#allocation6], 512
    $region25: #{tpu_custom_call.1} parent=1 // pred_fallthru
      _
    %755 = vsyncpa [#allocation5], 1
    %756 = vsyncpa [#allocation6], 1

</llo_original>
